<compile_context>
chip_gen: v7x
topology: tpu7x:2x2x1
jax: 0.10.0
libtpu: 0.0.40
codegen_flags: <defaults>
</compile_context>

<pallas_src>
import functools
import math

import jax
import jax.numpy as jnp
from jax import lax
from jax.experimental import pallas as pl
from jax.experimental.pallas import tpu as pltpu


def _sepconv_kernel(x_ref, wd_ref, bd_ref, wp_ref, bp_ref, o_ref, *,
                    KH, KW, W, Cin, Cout, imgs):
    """One grid step = `imgs` images packed on sublanes; flat H*W on lanes.

    x_ref : (imgs*Cin, H*W)       packed input  (row = img*Cin + cin)
    wd_ref: (KH*KW, imgs*Cin, 1)  depthwise taps, tap-major, tiled per image
    bd_ref: (imgs*Cin, 1)         depthwise bias, tiled per image
    wp_ref: (Cin, Cout, 1)        pointwise weights (per-Cin column of Cout)
    bp_ref: (Cout, 1)             pointwise bias
    o_ref : (imgs*Cout, H*W)      packed output (row = img*Cout + cout), lane-dense
    """
    x = x_ref[...]                            # (imgs*Cin, HW) f32
    HW = x.shape[-1]
    wd = wd_ref[...]                          # (KH*KW, imgs*Cin, 1)

    # --- depthwise KxK (VALID, stride=1, dilation=1): rolled taps, f32 VPU ---
    # Tap s = kh*W + kw reads x[p + s]; for valid output positions (row < OH,
    # col < OW) p + s < HW, so the roll wrap-around only touches positions the
    # wrapper trims.  No pad, no concatenate, no (8,128)-crossing lane slices.
    acc = x * wd[0]                           # tap (0, 0): no rotation needed
    for t in range(1, KH * KW):
        kh, kw = divmod(t, KW)
        s = kh * W + kw
        acc = acc + pltpu.roll(x, (HW - s) % HW, axis=1) * wd[t]
    acc = jnp.maximum(acc + bd_ref[...], 0.0)  # depthwise bias + ReLU

    # --- pointwise 1x1: Cin VPU scaled-adds per image ---
    # MXU deliberately skipped: K=Cin(=4), N=Cout(=8) would use ~3% of the array.
    # TODO(synk): at production channel counts (Cin, Cout >= ~64) switch to a
    # channels-on-lanes layout and an MXU matmul (128-tile f32 on v5e,
    # 256-tile bf16 with f32 accumulator on v6e/v7x).
    wp = wp_ref[...]                          # (Cin, Cout, 1)
    bp = bp_ref[...]                          # (Cout, 1)
    outs = []
    for i in range(imgs):
        o = acc[i * Cin:i * Cin + 1, :] * wp[0]            # (1,HW)*(Cout,1)->(Cout,HW)
        for ci in range(1, Cin):
            o = o + acc[i * Cin + ci:i * Cin + ci + 1, :] * wp[ci]
        outs.append(o + bp)
    # Single lane-dense (multiple-of-128 lanes) store of the whole output block.
    o_ref[...] = jnp.concatenate(outs, axis=0) if imgs > 1 else outs[0]


@functools.partial(jax.jit, static_argnames=("kernel_size",))
def sep_conv2d(x_nchw, wd, bd, wp, bp, *, kernel_size=3):
    """x_nchw: (B, Cin, H, W) f32.  Returns (B, Cout, OH, OW) f32 (PyTorch NCHW)."""
    B, Cin, H, W = x_nchw.shape
    KH = KW = kernel_size
    OH, OW = H - KH + 1, W - KW + 1           # padding=0, stride=1, dilation=1
    Cout = wp.shape[1]
    HW = H * W

    # Pack floor(8/Cin) images per grid step onto the 8 vreg sublanes (gcd with B
    # so the grid divides evenly).  B=2, Cin=4 -> imgs=2 -> a single-step grid.
    imgs = math.gcd(B, max(1, 8 // Cin))
    steps = B // imgs

    # Free, contiguous reshapes for the big input; weight tiling is tiny.
    x_flat = x_nchw.reshape(B * Cin, HW)
    wd_r = jnp.tile(wd.reshape(KH * KW, Cin, 1), (1, imgs, 1))   # (KH*KW, imgs*Cin, 1)
    bd_r = jnp.tile(bd.reshape(Cin, 1), (imgs, 1))               # (imgs*Cin, 1)
    wp_r = wp.reshape(Cin, Cout, 1)
    bp_r = bp.reshape(Cout, 1)

    kernel = functools.partial(_sepconv_kernel, KH=KH, KW=KW, W=W,
                               Cin=Cin, Cout=Cout, imgs=imgs)

    out_flat = pl.pallas_call(
        kernel,
        out_shape=jax.ShapeDtypeStruct((B * Cout, HW), jnp.float32),
        grid_spec=pltpu.PrefetchScalarGridSpec(
            num_scalar_prefetch=0,
            grid=(steps,),
            in_specs=[
                pl.BlockSpec((imgs * Cin, HW), lambda g: (g, 0)),
                pl.BlockSpec((KH * KW, imgs * Cin, 1), lambda g: (0, 0, 0)),
                pl.BlockSpec((imgs * Cin, 1), lambda g: (0, 0)),
                pl.BlockSpec((Cin, Cout, 1), lambda g: (0, 0, 0)),
                pl.BlockSpec((Cout, 1), lambda g: (0, 0)),
            ],
            out_specs=pl.BlockSpec((imgs * Cout, HW), lambda g: (g, 0)),
        ),
        compiler_params=pltpu.CompilerParams(
            dimension_semantics=("parallel",),      # batch steps across cores (no-op at steps=1)
            vmem_limit_bytes=32 * 1024 * 1024,      # explicit: < v7x 64 MiB, > v5e 16 MiB default
        ),
    )(x_flat, wd_r, bd_r, wp_r, bp_r)

    # Free reshape + tiny row/col trim of the small output; exact NCHW result.
    return out_flat.reshape(B, Cout, H, W)[:, :, :OH, :OW]


def _reference(x_nchw, wd, bd, wp, bp):
    """Pure-JAX reference matching PyTorch SepConv2d semantics (NCHW)."""
    Cin = x_nchw.shape[1]
    # depthwise: OIHW weights with groups=Cin -> (Cin, 1, KH, KW)
    wd_oihw = jnp.transpose(wd, (2, 0, 1))[:, None, :, :]
    y = lax.conv_general_dilated(
        x_nchw, wd_oihw, window_strides=(1, 1), padding="VALID",
        dimension_numbers=("NCHW", "OIHW", "NCHW"), feature_group_count=Cin)
    y = y + bd[None, :, None, None]
    y = jnp.maximum(y, 0.0)
    # pointwise: (Cout, Cin, 1, 1)
    wp_oihw = jnp.transpose(wp, (1, 0))[:, :, None, None]
    z = lax.conv_general_dilated(
        y, wp_oihw, window_strides=(1, 1), padding="VALID",
        dimension_numbers=("NCHW", "OIHW", "NCHW"))
    return z + bp[None, :, None, None]


if __name__ == "__main__":
    # Small shapes consistent with SepConv2d(in_channels=4, out_channels=8).
    B, Cin, H, W = 2, 4, 16, 16
    Cout, K = 8, 3

    key = jax.random.PRNGKey(0)
    kx, kwd, kbd, kwp, kbp = jax.random.split(key, 5)

    x = jax.random.normal(kx, (B, Cin, H, W), dtype=jnp.float32)
    wd = jax.random.normal(kwd, (K, K, Cin), dtype=jnp.float32) * 0.1   # depthwise weights
    bd = jax.random.normal(kbd, (Cin,), dtype=jnp.float32) * 0.1        # depthwise bias
    wp = jax.random.normal(kwp, (Cin, Cout), dtype=jnp.float32) * 0.1   # pointwise weights
    bp = jax.random.normal(kbp, (Cout,), dtype=jnp.float32) * 0.1       # pointwise bias

    out = sep_conv2d(x, wd, bd, wp, bp, kernel_size=K)
    out = jax.block_until_ready(out)

    ref = jax.block_until_ready(_reference(x, wd, bd, wp, bp))
    assert out.shape == (B, Cout, H - K + 1, W - K + 1), out.shape
    assert jnp.allclose(out, ref, atol=1e-4, rtol=1e-4), "mismatch vs reference"

    print("KERNEL_OK")
</pallas_src>

<mosaic_0001>
module attributes {stable_mosaic.version = 11 : i64} {
  func.func @_sepconv_kernel(%arg0: i32, %arg1: memref<8x256xf32, #tpu.memory_space<vmem>>, %arg2: memref<9x8x1xf32, #tpu.memory_space<vmem>>, %arg3: memref<8x1xf32, #tpu.memory_space<vmem>>, %arg4: memref<4x8x1xf32, #tpu.memory_space<vmem>>, %arg5: memref<8x1xf32, #tpu.memory_space<vmem>>, %arg6: memref<16x256xf32, #tpu.memory_space<vmem>>) attributes {dimension_semantics = [#tpu.dimension_semantics<parallel>], iteration_bounds = array<i64: 1>, scalar_prefetch = 0 : i64, scratch_operands = 0 : i64, tpu.core_type = #tpu.core_type<tc>, window_params = [{transform_indices = @transform_0, window_bounds = array<i64: 8, 256>}, {pipeline_mode = #tpu.pipeline_mode<synchronous>, transform_indices = @transform_1, window_bounds = array<i64: 9, 8, 1>}, {pipeline_mode = #tpu.pipeline_mode<synchronous>, transform_indices = @transform_2, window_bounds = array<i64: 8, 1>}, {pipeline_mode = #tpu.pipeline_mode<synchronous>, transform_indices = @transform_3, window_bounds = array<i64: 4, 8, 1>}, {pipeline_mode = #tpu.pipeline_mode<synchronous>, transform_indices = @transform_4, window_bounds = array<i64: 8, 1>}, {transform_indices = @transform_5, window_bounds = array<i64: 16, 256>}]} {
    %c0 = arith.constant 0 : index
    %c0_0 = arith.constant 0 : index
    %0 = vector.load %arg1[%c0, %c0_0] : memref<8x256xf32, #tpu.memory_space<vmem>>, vector<8x256xf32>
    %c0_1 = arith.constant 0 : index
    %c0_2 = arith.constant 0 : index
    %c0_3 = arith.constant 0 : index
    %1 = vector.load %arg2[%c0_1, %c0_2, %c0_3] : memref<9x8x1xf32, #tpu.memory_space<vmem>>, vector<9x8x1xf32>
    %2 = vector.extract_strided_slice %1 {offsets = [0, 0, 0], sizes = [1, 8, 1], strides = [1, 1, 1]} : vector<9x8x1xf32> to vector<1x8x1xf32>
    %3 = vector.shape_cast %2 : vector<1x8x1xf32> to vector<8x1xf32>
    %4 = vector.broadcast %3 : vector<8x1xf32> to vector<8x256xf32>
    %5 = arith.mulf %0, %4 : vector<8x256xf32>
    %c255_i32 = arith.constant 255 : i32
    %6 = tpu.dynamic_rotate %0 by %c255_i32 dim 1 : vector<8x256xf32>, i32 -> vector<8x256xf32>
    %7 = vector.extract_strided_slice %1 {offsets = [1, 0, 0], sizes = [1, 8, 1], strides = [1, 1, 1]} : vector<9x8x1xf32> to vector<1x8x1xf32>
    %8 = vector.shape_cast %7 : vector<1x8x1xf32> to vector<8x1xf32>
    %9 = vector.broadcast %8 : vector<8x1xf32> to vector<8x256xf32>
    %10 = arith.mulf %6, %9 : vector<8x256xf32>
    %11 = arith.addf %5, %10 : vector<8x256xf32>
    %c254_i32 = arith.constant 254 : i32
    %12 = tpu.dynamic_rotate %0 by %c254_i32 dim 1 : vector<8x256xf32>, i32 -> vector<8x256xf32>
    %13 = vector.extract_strided_slice %1 {offsets = [2, 0, 0], sizes = [1, 8, 1], strides = [1, 1, 1]} : vector<9x8x1xf32> to vector<1x8x1xf32>
    %14 = vector.shape_cast %13 : vector<1x8x1xf32> to vector<8x1xf32>
    %15 = vector.broadcast %14 : vector<8x1xf32> to vector<8x256xf32>
    %16 = arith.mulf %12, %15 : vector<8x256xf32>
    %17 = arith.addf %11, %16 : vector<8x256xf32>
    %c240_i32 = arith.constant 240 : i32
    %18 = tpu.dynamic_rotate %0 by %c240_i32 dim 1 : vector<8x256xf32>, i32 -> vector<8x256xf32>
    %19 = vector.extract_strided_slice %1 {offsets = [3, 0, 0], sizes = [1, 8, 1], strides = [1, 1, 1]} : vector<9x8x1xf32> to vector<1x8x1xf32>
    %20 = vector.shape_cast %19 : vector<1x8x1xf32> to vector<8x1xf32>
    %21 = vector.broadcast %20 : vector<8x1xf32> to vector<8x256xf32>
    %22 = arith.mulf %18, %21 : vector<8x256xf32>
    %23 = arith.addf %17, %22 : vector<8x256xf32>
    %c239_i32 = arith.constant 239 : i32
    %24 = tpu.dynamic_rotate %0 by %c239_i32 dim 1 : vector<8x256xf32>, i32 -> vector<8x256xf32>
    %25 = vector.extract_strided_slice %1 {offsets = [4, 0, 0], sizes = [1, 8, 1], strides = [1, 1, 1]} : vector<9x8x1xf32> to vector<1x8x1xf32>
    %26 = vector.shape_cast %25 : vector<1x8x1xf32> to vector<8x1xf32>
    %27 = vector.broadcast %26 : vector<8x1xf32> to vector<8x256xf32>
    %28 = arith.mulf %24, %27 : vector<8x256xf32>
    %29 = arith.addf %23, %28 : vector<8x256xf32>
    %c238_i32 = arith.constant 238 : i32
    %30 = tpu.dynamic_rotate %0 by %c238_i32 dim 1 : vector<8x256xf32>, i32 -> vector<8x256xf32>
    %31 = vector.extract_strided_slice %1 {offsets = [5, 0, 0], sizes = [1, 8, 1], strides = [1, 1, 1]} : vector<9x8x1xf32> to vector<1x8x1xf32>
    %32 = vector.shape_cast %31 : vector<1x8x1xf32> to vector<8x1xf32>
    %33 = vector.broadcast %32 : vector<8x1xf32> to vector<8x256xf32>
    %34 = arith.mulf %30, %33 : vector<8x256xf32>
    %35 = arith.addf %29, %34 : vector<8x256xf32>
    %c224_i32 = arith.constant 224 : i32
    %36 = tpu.dynamic_rotate %0 by %c224_i32 dim 1 : vector<8x256xf32>, i32 -> vector<8x256xf32>
    %37 = vector.extract_strided_slice %1 {offsets = [6, 0, 0], sizes = [1, 8, 1], strides = [1, 1, 1]} : vector<9x8x1xf32> to vector<1x8x1xf32>
    %38 = vector.shape_cast %37 : vector<1x8x1xf32> to vector<8x1xf32>
    %39 = vector.broadcast %38 : vector<8x1xf32> to vector<8x256xf32>
    %40 = arith.mulf %36, %39 : vector<8x256xf32>
    %41 = arith.addf %35, %40 : vector<8x256xf32>
    %c223_i32 = arith.constant 223 : i32
    %42 = tpu.dynamic_rotate %0 by %c223_i32 dim 1 : vector<8x256xf32>, i32 -> vector<8x256xf32>
    %43 = vector.extract_strided_slice %1 {offsets = [7, 0, 0], sizes = [1, 8, 1], strides = [1, 1, 1]} : vector<9x8x1xf32> to vector<1x8x1xf32>
    %44 = vector.shape_cast %43 : vector<1x8x1xf32> to vector<8x1xf32>
    %45 = vector.broadcast %44 : vector<8x1xf32> to vector<8x256xf32>
    %46 = arith.mulf %42, %45 : vector<8x256xf32>
    %47 = arith.addf %41, %46 : vector<8x256xf32>
    %c222_i32 = arith.constant 222 : i32
    %48 = tpu.dynamic_rotate %0 by %c222_i32 dim 1 : vector<8x256xf32>, i32 -> vector<8x256xf32>
    %49 = vector.extract_strided_slice %1 {offsets = [8, 0, 0], sizes = [1, 8, 1], strides = [1, 1, 1]} : vector<9x8x1xf32> to vector<1x8x1xf32>
    %50 = vector.shape_cast %49 : vector<1x8x1xf32> to vector<8x1xf32>
    %51 = vector.broadcast %50 : vector<8x1xf32> to vector<8x256xf32>
    %52 = arith.mulf %48, %51 : vector<8x256xf32>
    %53 = arith.addf %47, %52 : vector<8x256xf32>
    %c0_4 = arith.constant 0 : index
    %c0_5 = arith.constant 0 : index
    %54 = vector.load %arg3[%c0_4, %c0_5] : memref<8x1xf32, #tpu.memory_space<vmem>>, vector<8x1xf32>
    %55 = vector.broadcast %54 : vector<8x1xf32> to vector<8x256xf32>
    %56 = arith.addf %53, %55 : vector<8x256xf32>
    %cst = arith.constant 0.000000e+00 : f32
    %57 = vector.broadcast %cst : f32 to vector<8x256xf32>
    %58 = arith.maximumf %56, %57 : vector<8x256xf32>
    %c0_6 = arith.constant 0 : index
    %c0_7 = arith.constant 0 : index
    %c0_8 = arith.constant 0 : index
    %59 = vector.load %arg4[%c0_6, %c0_7, %c0_8] : memref<4x8x1xf32, #tpu.memory_space<vmem>>, vector<4x8x1xf32>
    %c0_9 = arith.constant 0 : index
    %c0_10 = arith.constant 0 : index
    %60 = vector.load %arg5[%c0_9, %c0_10] : memref<8x1xf32, #tpu.memory_space<vmem>>, vector<8x1xf32>
    %61 = vector.extract_strided_slice %58 {offsets = [0, 0], sizes = [1, 256], strides = [1, 1]} : vector<8x256xf32> to vector<1x256xf32>
    %62 = vector.extract_strided_slice %59 {offsets = [0, 0, 0], sizes = [1, 8, 1], strides = [1, 1, 1]} : vector<4x8x1xf32> to vector<1x8x1xf32>
    %63 = vector.shape_cast %62 : vector<1x8x1xf32> to vector<8x1xf32>
    %64 = vector.broadcast %61 : vector<1x256xf32> to vector<8x256xf32>
    %65 = vector.broadcast %63 : vector<8x1xf32> to vector<8x256xf32>
    %66 = arith.mulf %64, %65 : vector<8x256xf32>
    %67 = vector.extract_strided_slice %58 {offsets = [1, 0], sizes = [1, 256], strides = [1, 1]} : vector<8x256xf32> to vector<1x256xf32>
    %68 = vector.extract_strided_slice %59 {offsets = [1, 0, 0], sizes = [1, 8, 1], strides = [1, 1, 1]} : vector<4x8x1xf32> to vector<1x8x1xf32>
    %69 = vector.shape_cast %68 : vector<1x8x1xf32> to vector<8x1xf32>
    %70 = vector.broadcast %67 : vector<1x256xf32> to vector<8x256xf32>
    %71 = vector.broadcast %69 : vector<8x1xf32> to vector<8x256xf32>
    %72 = arith.mulf %70, %71 : vector<8x256xf32>
    %73 = arith.addf %66, %72 : vector<8x256xf32>
    %74 = vector.extract_strided_slice %58 {offsets = [2, 0], sizes = [1, 256], strides = [1, 1]} : vector<8x256xf32> to vector<1x256xf32>
    %75 = vector.extract_strided_slice %59 {offsets = [2, 0, 0], sizes = [1, 8, 1], strides = [1, 1, 1]} : vector<4x8x1xf32> to vector<1x8x1xf32>
    %76 = vector.shape_cast %75 : vector<1x8x1xf32> to vector<8x1xf32>
    %77 = vector.broadcast %74 : vector<1x256xf32> to vector<8x256xf32>
    %78 = vector.broadcast %76 : vector<8x1xf32> to vector<8x256xf32>
    %79 = arith.mulf %77, %78 : vector<8x256xf32>
    %80 = arith.addf %73, %79 : vector<8x256xf32>
    %81 = vector.extract_strided_slice %58 {offsets = [3, 0], sizes = [1, 256], strides = [1, 1]} : vector<8x256xf32> to vector<1x256xf32>
    %82 = vector.extract_strided_slice %59 {offsets = [3, 0, 0], sizes = [1, 8, 1], strides = [1, 1, 1]} : vector<4x8x1xf32> to vector<1x8x1xf32>
    %83 = vector.shape_cast %82 : vector<1x8x1xf32> to vector<8x1xf32>
    %84 = vector.broadcast %81 : vector<1x256xf32> to vector<8x256xf32>
    %85 = vector.broadcast %83 : vector<8x1xf32> to vector<8x256xf32>
    %86 = arith.mulf %84, %85 : vector<8x256xf32>
    %87 = arith.addf %80, %86 : vector<8x256xf32>
    %88 = vector.broadcast %60 : vector<8x1xf32> to vector<8x256xf32>
    %89 = arith.addf %87, %88 : vector<8x256xf32>
    %90 = vector.extract_strided_slice %58 {offsets = [4, 0], sizes = [1, 256], strides = [1, 1]} : vector<8x256xf32> to vector<1x256xf32>
    %91 = vector.extract_strided_slice %59 {offsets = [0, 0, 0], sizes = [1, 8, 1], strides = [1, 1, 1]} : vector<4x8x1xf32> to vector<1x8x1xf32>
    %92 = vector.shape_cast %91 : vector<1x8x1xf32> to vector<8x1xf32>
    %93 = vector.broadcast %90 : vector<1x256xf32> to vector<8x256xf32>
    %94 = vector.broadcast %92 : vector<8x1xf32> to vector<8x256xf32>
    %95 = arith.mulf %93, %94 : vector<8x256xf32>
    %96 = vector.extract_strided_slice %58 {offsets = [5, 0], sizes = [1, 256], strides = [1, 1]} : vector<8x256xf32> to vector<1x256xf32>
    %97 = vector.extract_strided_slice %59 {offsets = [1, 0, 0], sizes = [1, 8, 1], strides = [1, 1, 1]} : vector<4x8x1xf32> to vector<1x8x1xf32>
    %98 = vector.shape_cast %97 : vector<1x8x1xf32> to vector<8x1xf32>
    %99 = vector.broadcast %96 : vector<1x256xf32> to vector<8x256xf32>
    %100 = vector.broadcast %98 : vector<8x1xf32> to vector<8x256xf32>
    %101 = arith.mulf %99, %100 : vector<8x256xf32>
    %102 = arith.addf %95, %101 : vector<8x256xf32>
    %103 = vector.extract_strided_slice %58 {offsets = [6, 0], sizes = [1, 256], strides = [1, 1]} : vector<8x256xf32> to vector<1x256xf32>
    %104 = vector.extract_strided_slice %59 {offsets = [2, 0, 0], sizes = [1, 8, 1], strides = [1, 1, 1]} : vector<4x8x1xf32> to vector<1x8x1xf32>
    %105 = vector.shape_cast %104 : vector<1x8x1xf32> to vector<8x1xf32>
    %106 = vector.broadcast %103 : vector<1x256xf32> to vector<8x256xf32>
    %107 = vector.broadcast %105 : vector<8x1xf32> to vector<8x256xf32>
    %108 = arith.mulf %106, %107 : vector<8x256xf32>
    %109 = arith.addf %102, %108 : vector<8x256xf32>
    %110 = vector.extract_strided_slice %58 {offsets = [7, 0], sizes = [1, 256], strides = [1, 1]} : vector<8x256xf32> to vector<1x256xf32>
    %111 = vector.extract_strided_slice %59 {offsets = [3, 0, 0], sizes = [1, 8, 1], strides = [1, 1, 1]} : vector<4x8x1xf32> to vector<1x8x1xf32>
    %112 = vector.shape_cast %111 : vector<1x8x1xf32> to vector<8x1xf32>
    %113 = vector.broadcast %110 : vector<1x256xf32> to vector<8x256xf32>
    %114 = vector.broadcast %112 : vector<8x1xf32> to vector<8x256xf32>
    %115 = arith.mulf %113, %114 : vector<8x256xf32>
    %116 = arith.addf %109, %115 : vector<8x256xf32>
    %117 = vector.broadcast %60 : vector<8x1xf32> to vector<8x256xf32>
    %118 = arith.addf %116, %117 : vector<8x256xf32>
    %119 = tpu.concatenate %89, %118 in 0 : vector<8x256xf32>, vector<8x256xf32> -> vector<16x256xf32>
    %c0_11 = arith.constant 0 : index
    %c0_12 = arith.constant 0 : index
    %120 = vector.load %arg6[%c0_11, %c0_12] : memref<16x256xf32, #tpu.memory_space<vmem>>, vector<16x256xf32>
    tpu.vector_store %arg6[%c0_11, %c0_12], %119 {strides = array<i32>} : memref<16x256xf32, #tpu.memory_space<vmem>>, vector<16x256xf32>,
    return
  }
  func.func @transform_0(%arg0: i32) -> (i32, i32) {
    %c0_i32 = arith.constant 0 : i32
    %c0_i32_0 = arith.constant 0 : i32
    return %arg0, %c0_i32 : i32, i32
  }
  func.func @transform_1(%arg0: i32) -> (i32, i32, i32) {
    %c0_i32 = arith.constant 0 : i32
    %c0_i32_0 = arith.constant 0 : i32
    %c0_i32_1 = arith.constant 0 : i32
    %c0_i32_2 = arith.constant 0 : i32
    return %c0_i32, %c0_i32_0, %c0_i32_1 : i32, i32, i32
  }
  func.func @transform_2(%arg0: i32) -> (i32, i32) {
    %c0_i32 = arith.constant 0 : i32
    %c0_i32_0 = arith.constant 0 : i32
    %c0_i32_1 = arith.constant 0 : i32
    return %c0_i32, %c0_i32_0 : i32, i32
  }
  func.func @transform_3(%arg0: i32) -> (i32, i32, i32) {
    %c0_i32 = arith.constant 0 : i32
    %c0_i32_0 = arith.constant 0 : i32
    %c0_i32_1 = arith.constant 0 : i32
    %c0_i32_2 = arith.constant 0 : i32
    return %c0_i32, %c0_i32_0, %c0_i32_1 : i32, i32, i32
  }
  func.func @transform_4(%arg0: i32) -> (i32, i32) {
    %c0_i32 = arith.constant 0 : i32
    %c0_i32_0 = arith.constant 0 : i32
    %c0_i32_1 = arith.constant 0 : i32
    return %c0_i32, %c0_i32_0 : i32, i32
  }
  func.func @transform_5(%arg0: i32) -> (i32, i32) {
    %c0_i32 = arith.constant 0 : i32
    %c0_i32_0 = arith.constant 0 : i32
    return %arg0, %c0_i32 : i32, i32
  }
}

</mosaic_0001>

<llo_original>
// kernel: sep_conv2d.1
$region0: #{sep_conv2d.1}
  #allocation0 [shape = 'u32[]', space=smem, size = 0x4, offset = 0x4, fixed_abs, tag = 'smem constant byte address 0x4 - core index']
  #allocation1 [shape = 'u32[144,128]{1,0:T(1,128)}', space=vmem, size = 0x12000, scoped, tag = 'internal scratch']
  %s0 = inlined_call_operand.vmem [shape: f32[8,256], index: 0, kind: input, shape index: {}]
  %s1 = inlined_call_operand.vmem [shape: f32[9,8,1], index: 1, kind: input, shape index: {}]
  %s2 = inlined_call_operand.vmem [shape: f32[8,1], index: 2, kind: input, shape index: {}]
  %s3 = inlined_call_operand.vmem [shape: f32[4,8,1], index: 3, kind: input, shape index: {}]
  %s4 = inlined_call_operand.vmem [shape: f32[8,1], index: 4, kind: input, shape index: {}]
  %s5 = inlined_call_operand.vmem [shape: f32[16,256], index: 5, kind: output, shape index: {}]
  %s6 = sld [smem:[#allocation0]]
  $region30: #{sep_conv2d.1} parent=0
    _
  %s8 = ssub.s32 1, %s6
  %s9 = scalar_select 0, %s8, %s6
  // Predicated region
  $region2: #{sep_conv2d.1} parent=0 // pred_check
    _
  $region3: #{sep_conv2d.1} parent=0 // pred_check_branch
    %11 = sbr.rel (0) target = $region5
  $region4: #{sep_conv2d.1} parent=0 // pred_region
    _
  $region5: #{sep_conv2d.1} parent=0 // pred_fallthru
    _
  // Predicated region
  $region6: #{sep_conv2d.1} parent=0 // pred_check
    _
  $region7: #{sep_conv2d.1} parent=0 // pred_check_branch
    %13 = sbr.rel (0) target = $region9
  $region8: #{sep_conv2d.1} parent=0 // pred_region
    _
  $region9: #{sep_conv2d.1} parent=0 // pred_fallthru
    _
  // Predicated region
  $region10: #{sep_conv2d.1} parent=0 // pred_check
    _
  $region11: #{sep_conv2d.1} parent=0 // pred_check_branch
    %15 = sbr.rel (0) target = $region13
  $region12: #{sep_conv2d.1} parent=0 // pred_region
    _
  $region13: #{sep_conv2d.1} parent=0 // pred_fallthru
    _
  // Predicated region
  $region14: #{sep_conv2d.1} parent=0 // pred_check
    _
  $region15: #{sep_conv2d.1} parent=0 // pred_check_branch
    %17 = sbr.rel (0) target = $region17
  $region16: #{sep_conv2d.1} parent=0 // pred_region
    _
  $region17: #{sep_conv2d.1} parent=0 // pred_fallthru
    _
  // Predicated region
  $region18: #{sep_conv2d.1} parent=0 // pred_check
    _
  $region19: #{sep_conv2d.1} parent=0 // pred_check_branch
    %19 = sbr.rel (0) target = $region21
  $region20: #{sep_conv2d.1} parent=0 // pred_region
    _
  $region21: #{sep_conv2d.1} parent=0 // pred_fallthru
    _
  %v20 = vld [vmem:[%s0] sm:$0xff]
  %v21 = vld [vmem:[%s0 + $0x8] sm:$0xff]
  %v22 = vld [vmem:[%s1] sm:$0xff]
  %v23 = vld [vmem:[%s1 + $0x8] sm:$0xff]
  %v24 = vld [vmem:[%s1 + $0x10] sm:$0xff]
  %v25 = vld [vmem:[%s1 + $0x18] sm:$0xff]
  %v26 = vld [vmem:[%s1 + $0x20] sm:$0xff]
  %v27 = vld [vmem:[%s1 + $0x28] sm:$0xff]
  %v28 = vld [vmem:[%s1 + $0x30] sm:$0xff]
  %v29 = vld [vmem:[%s1 + $0x38] sm:$0xff]
  %v30 = vld [vmem:[%s1 + $0x40] sm:$0xff]
  %32 = vset.pattern.permute.xlu0 0
  %33 = vperm.xlu0 %32, %v22
  %v34 = vpop.permute.xlu0 %33
  %v36 = vmul.f32 %v20, %v34
  %v37 = vmul.f32 %v21, %v34
  %38 = vrot.lane.b32.xlu0 %v20, 127
  %v39 = vpop.permute.xlu0 %38
  %40 = vrot.lane.b32.xlu0 %v21, 127
  %v41 = vpop.permute.xlu0 %40
  %v42 = vlaneseq
  %v43 = vand.u32 %v42, 127
  %vm44 = vcmp.lt.s32.totalorder %v43, 127
  %v45 = vsel %vm44, %v39, %v41
  %v46 = vsel %vm44, %v41, %v39
  %48 = vset.pattern.permute.xlu0 0
  %49 = vperm.xlu0 %48, %v23
  %v50 = vpop.permute.xlu0 %49
  %v52 = vmul.f32 %v45, %v50
  %v53 = vmul.f32 %v46, %v50
  %v54 = vadd.f32 %v36, %v52
  %v55 = vadd.f32 %v37, %v53
  %56 = vrot.lane.b32.xlu0 %v20, 126
  %v57 = vpop.permute.xlu0 %56
  %58 = vrot.lane.b32.xlu0 %v21, 126
  %v59 = vpop.permute.xlu0 %58
  %vm60 = vcmp.lt.s32.totalorder %v43, 126
  %v61 = vsel %vm60, %v57, %v59
  %v62 = vsel %vm60, %v59, %v57
  %64 = vset.pattern.permute.xlu0 0
  %65 = vperm.xlu0 %64, %v24
  %v66 = vpop.permute.xlu0 %65
  %v68 = vmul.f32 %v61, %v66
  %v69 = vmul.f32 %v62, %v66
  %v70 = vadd.f32 %v54, %v68
  %v71 = vadd.f32 %v55, %v69
  %72 = vrot.lane.b32.xlu0 %v20, 112
  %v73 = vpop.permute.xlu0 %72
  %74 = vrot.lane.b32.xlu0 %v21, 112
  %v75 = vpop.permute.xlu0 %74
  %vm76 = vcmp.lt.s32.totalorder %v43, 112
  %v77 = vsel %vm76, %v73, %v75
  %v78 = vsel %vm76, %v75, %v73
  %80 = vset.pattern.permute.xlu0 0
  %81 = vperm.xlu0 %80, %v25
  %v82 = vpop.permute.xlu0 %81
  %v84 = vmul.f32 %v77, %v82
  %v85 = vmul.f32 %v78, %v82
  %v86 = vadd.f32 %v70, %v84
  %v87 = vadd.f32 %v71, %v85
  %88 = vrot.lane.b32.xlu0 %v20, 111
  %v89 = vpop.permute.xlu0 %88
  %90 = vrot.lane.b32.xlu0 %v21, 111
  %v91 = vpop.permute.xlu0 %90
  %vm92 = vcmp.lt.s32.totalorder %v43, 111
  %v93 = vsel %vm92, %v89, %v91
  %v94 = vsel %vm92, %v91, %v89
  %96 = vset.pattern.permute.xlu0 0
  %97 = vperm.xlu0 %96, %v26
  %v98 = vpop.permute.xlu0 %97
  %v100 = vmul.f32 %v93, %v98
  %v101 = vmul.f32 %v94, %v98
  %v102 = vadd.f32 %v86, %v100
  %v103 = vadd.f32 %v87, %v101
  %104 = vrot.lane.b32.xlu0 %v20, 110
  %v105 = vpop.permute.xlu0 %104
  %106 = vrot.lane.b32.xlu0 %v21, 110
  %v107 = vpop.permute.xlu0 %106
  %vm108 = vcmp.lt.s32.totalorder %v43, 110
  %v109 = vsel %vm108, %v105, %v107
  %v110 = vsel %vm108, %v107, %v105
  %112 = vset.pattern.permute.xlu0 0
  %113 = vperm.xlu0 %112, %v27
  %v114 = vpop.permute.xlu0 %113
  %v116 = vmul.f32 %v109, %v114
  %v117 = vmul.f32 %v110, %v114
  %v118 = vadd.f32 %v102, %v116
  %v119 = vadd.f32 %v103, %v117
  %120 = vrot.lane.b32.xlu0 %v20, 96
  %v121 = vpop.permute.xlu0 %120
  %122 = vrot.lane.b32.xlu0 %v21, 96
  %v123 = vpop.permute.xlu0 %122
  %vm124 = vcmp.lt.s32.totalorder %v43, 96
  %v125 = vsel %vm124, %v121, %v123
  %v126 = vsel %vm124, %v123, %v121
  %128 = vset.pattern.permute.xlu0 0
  %129 = vperm.xlu0 %128, %v28
  %v130 = vpop.permute.xlu0 %129
  %v132 = vmul.f32 %v125, %v130
  %v133 = vmul.f32 %v126, %v130
  %v134 = vadd.f32 %v118, %v132
  %v135 = vadd.f32 %v119, %v133
  %136 = vrot.lane.b32.xlu0 %v20, 95
  %v137 = vpop.permute.xlu0 %136
  %138 = vrot.lane.b32.xlu0 %v21, 95
  %v139 = vpop.permute.xlu0 %138
  %vm140 = vcmp.lt.s32.totalorder %v43, 95
  %v141 = vsel %vm140, %v137, %v139
  %v142 = vsel %vm140, %v139, %v137
  %144 = vset.pattern.permute.xlu0 0
  %145 = vperm.xlu0 %144, %v29
  %v146 = vpop.permute.xlu0 %145
  %v148 = vmul.f32 %v141, %v146
  %v149 = vmul.f32 %v142, %v146
  %v150 = vadd.f32 %v134, %v148
  %v151 = vadd.f32 %v135, %v149
  %152 = vrot.lane.b32.xlu0 %v20, 94
  %v153 = vpop.permute.xlu0 %152
  %154 = vrot.lane.b32.xlu0 %v21, 94
  %v155 = vpop.permute.xlu0 %154
  %vm156 = vcmp.lt.s32.totalorder %v43, 94
  %v157 = vsel %vm156, %v153, %v155
  %v158 = vsel %vm156, %v155, %v153
  %160 = vset.pattern.permute.xlu0 0
  %161 = vperm.xlu0 %160, %v30
  %v162 = vpop.permute.xlu0 %161
  %v164 = vmul.f32 %v157, %v162
  %v165 = vmul.f32 %v158, %v162
  %v166 = vadd.f32 %v150, %v164
  %v167 = vadd.f32 %v151, %v165
  %v168 = vld [vmem:[%s2] sm:$0xff]
  %170 = vset.pattern.permute.xlu0 0
  %171 = vperm.xlu0 %170, %v168
  %v172 = vpop.permute.xlu0 %171
  %v174 = vadd.f32 %v166, %v172
  %v175 = vadd.f32 %v167, %v172
  %v176 = vmax.f32 %v174, 0.0
  %v177 = vmax.f32 %v175, 0.0
  %v178 = vld [vmem:[%s3] sm:$0xff]
  %v179 = vld [vmem:[%s3 + $0x8] sm:$0xff]
  %v180 = vld [vmem:[%s3 + $0x10] sm:$0xff]
  %v181 = vld [vmem:[%s3 + $0x18] sm:$0xff]
  %v182 = vld [vmem:[%s4] sm:$0xff]
  %v183 = vlaneseq
  %v184 = vshrl.u32 %v183, 7
  %v185 = vsub.s32 0, %v184
  %v186 = vrot.slane %v176, %v185
  %v187 = vlaneseq
  %v188 = vshrl.u32 %v187, 7
  %v189 = vsub.s32 0, %v188
  %v190 = vrot.slane %v177, %v189
  %192 = vset.pattern.permute.xlu0 0
  %193 = vperm.xlu0 %192, %v178
  %v194 = vpop.permute.xlu0 %193
  %v196 = vmul.f32 %v186, %v194
  %v197 = vmul.f32 %v190, %v194
  %v198 = vlaneseq
  %v199 = vshrl.u32 %v198, 7
  %v200 = vsub.s32 1, %v199
  %v201 = vrot.slane %v176, %v200
  %v202 = vlaneseq
  %v203 = vshrl.u32 %v202, 7
  %v204 = vsub.s32 1, %v203
  %v205 = vrot.slane %v177, %v204
  %207 = vset.pattern.permute.xlu0 0
  %208 = vperm.xlu0 %207, %v179
  %v209 = vpop.permute.xlu0 %208
  %v211 = vmul.f32 %v201, %v209
  %v212 = vmul.f32 %v205, %v209
  %v213 = vadd.f32 %v196, %v211
  %v214 = vadd.f32 %v197, %v212
  %v215 = vlaneseq
  %v216 = vshrl.u32 %v215, 7
  %v217 = vsub.s32 2, %v216
  %v218 = vrot.slane %v176, %v217
  %v219 = vlaneseq
  %v220 = vshrl.u32 %v219, 7
  %v221 = vsub.s32 2, %v220
  %v222 = vrot.slane %v177, %v221
  %224 = vset.pattern.permute.xlu0 0
  %225 = vperm.xlu0 %224, %v180
  %v226 = vpop.permute.xlu0 %225
  %v228 = vmul.f32 %v218, %v226
  %v229 = vmul.f32 %v222, %v226
  %v230 = vadd.f32 %v213, %v228
  %v231 = vadd.f32 %v214, %v229
  %v232 = vlaneseq
  %v233 = vshrl.u32 %v232, 7
  %v234 = vsub.s32 3, %v233
  %v235 = vrot.slane %v176, %v234
  %v236 = vlaneseq
  %v237 = vshrl.u32 %v236, 7
  %v238 = vsub.s32 3, %v237
  %v239 = vrot.slane %v177, %v238
  %241 = vset.pattern.permute.xlu0 0
  %242 = vperm.xlu0 %241, %v181
  %v243 = vpop.permute.xlu0 %242
  %v245 = vmul.f32 %v235, %v243
  %v246 = vmul.f32 %v239, %v243
  %v247 = vadd.f32 %v230, %v245
  %v248 = vadd.f32 %v231, %v246
  %250 = vset.pattern.permute.xlu0 0
  %251 = vperm.xlu0 %250, %v182
  %v252 = vpop.permute.xlu0 %251
  %v254 = vadd.f32 %v247, %v252
  %v255 = vadd.f32 %v248, %v252
  %v256 = vlaneseq
  %v257 = vshrl.u32 %v256, 7
  %v258 = vsub.s32 4, %v257
  %v259 = vrot.slane %v176, %v258
  %v260 = vlaneseq
  %v261 = vshrl.u32 %v260, 7
  %v262 = vsub.s32 4, %v261
  %v263 = vrot.slane %v177, %v262
  %v264 = vmul.f32 %v259, %v194
  %v265 = vmul.f32 %v263, %v194
  %v266 = vlaneseq
  %v267 = vshrl.u32 %v266, 7
  %v268 = vsub.s32 5, %v267
  %v269 = vrot.slane %v176, %v268
  %v270 = vlaneseq
  %v271 = vshrl.u32 %v270, 7
  %v272 = vsub.s32 5, %v271
  %v273 = vrot.slane %v177, %v272
  %v274 = vmul.f32 %v269, %v209
  %v275 = vmul.f32 %v273, %v209
  %v276 = vadd.f32 %v264, %v274
  %v277 = vadd.f32 %v265, %v275
  %v278 = vlaneseq
  %v279 = vshrl.u32 %v278, 7
  %v280 = vsub.s32 6, %v279
  %v281 = vrot.slane %v176, %v280
  %v282 = vlaneseq
  %v283 = vshrl.u32 %v282, 7
  %v284 = vsub.s32 6, %v283
  %v285 = vrot.slane %v177, %v284
  %v286 = vmul.f32 %v281, %v226
  %v287 = vmul.f32 %v285, %v226
  %v288 = vadd.f32 %v276, %v286
  %v289 = vadd.f32 %v277, %v287
  %v290 = vlaneseq
  %v291 = vshrl.u32 %v290, 7
  %v292 = vsub.s32 7, %v291
  %v293 = vrot.slane %v176, %v292
  %v294 = vlaneseq
  %v295 = vshrl.u32 %v294, 7
  %v296 = vsub.s32 7, %v295
  %v297 = vrot.slane %v177, %v296
  %v298 = vmul.f32 %v293, %v243
  %v299 = vmul.f32 %v297, %v243
  %v300 = vadd.f32 %v288, %v298
  %v301 = vadd.f32 %v289, %v299
  %v302 = vadd.f32 %v300, %v252
  %v303 = vadd.f32 %v301, %v252
  %304 = vst [vmem:[%s5] sm:$0xff] %v254
  %305 = vst [vmem:[%s5 + $0x8] sm:$0xff] %v255
  %306 = vst [vmem:[%s5 + $0x10] sm:$0xff] %v302
  %307 = vst [vmem:[%s5 + $0x18] sm:$0xff] %v303
  // Predicated region
  $region22: #{sep_conv2d.1} parent=0 // pred_check
    _
  $region23: #{sep_conv2d.1} parent=0 // pred_check_branch
    %309 = sbr.rel (0) target = $region25
  $region24: #{sep_conv2d.1} parent=0 // pred_region
    _
  $region25: #{sep_conv2d.1} parent=0 // pred_fallthru
    _
  // Predicated region
  $region26: #{sep_conv2d.1} parent=0 // pred_check
    _
  $region27: #{sep_conv2d.1} parent=0 // pred_check_branch
    %311 = sbr.rel (0) target = $region29
  $region28: #{sep_conv2d.1} parent=0 // pred_region
    _
  $region29: #{sep_conv2d.1} parent=0 // pred_fallthru
    _

</llo_original>
